<compile_context>
chip_gen: v5e
topology: v5e:2x2
jax: 0.10.0
libtpu: 0.0.40
codegen_flags: <defaults>
</compile_context>

<pallas_src>
import functools

import jax
import jax.numpy as jnp
from jax.experimental import pallas as pl
from jax.experimental.pallas import tpu as pltpu


def _round_up(a, b):
    return (a + b - 1) // b * b


# ----------------------------------------------------------------------------
# Fused kernel: conv1 -> conv2 -> BatchNorm(batch stats) -> ReLU
# ----------------------------------------------------------------------------
def _fused_conv_block_kernel(x_ref, m1_ref, b1_ref, m2_ref, b2_ref,
                             sel_ref, selt_ref, g_ref, beta_ref,
                             o_ref, xpad2_ref, *,
                             N, Hs1, Ho1, WoC1, Hs2, Ho2, Wo2, WoC2,
                             KH, pad, eps):
    R1 = N * Hs1 - KH + 1      # rows of the batched conv1 matmul
    R2 = N * Hs2 - KH + 1      # rows of the batched conv2 matmul

    # ---- conv1: KH tall matmuls spanning ALL batches at once ----
    acc1 = jnp.zeros((R1, WoC1), jnp.float32)
    for kh in range(KH):
        acc1 = acc1 + jnp.dot(x_ref[kh:kh + R1, :], m1_ref[kh],
                              preferred_element_type=jnp.float32)

    # Scatter valid conv1 rows (+bias) into conv2's H-padded VMEM slab.
    # Only the 2*pad boundary rows per image are zeroed (as part of the same
    # contiguous store); rows beyond Hp2 in each Hs2-aligned window are never
    # read by valid conv2 output rows, so they stay untouched.
    zrow = jnp.zeros((pad, WoC1), jnp.float32)
    for n in range(N):
        blk = jnp.concatenate(
            [zrow, acc1[n * Hs1:n * Hs1 + Ho1, :] + b1_ref[...], zrow], axis=0)
        xpad2_ref[n * Hs2:n * Hs2 + Ho1 + 2 * pad, :] = blk.astype(
            xpad2_ref.dtype)

    # ---- conv2: same batched structure ----
    acc2 = jnp.zeros((R2, WoC2), jnp.float32)
    for kh in range(KH):
        acc2 = acc2 + jnp.dot(xpad2_ref[kh:kh + R2, :], m2_ref[kh],
                              preferred_element_type=jnp.float32)

    # Pre-BN rows go straight to the 256-lane output slab (unmasked vst);
    # cross-batch garbage rows of acc2 are skipped here so they never touch
    # the BatchNorm statistics.
    for n in range(N):
        o_ref[n * Ho2:(n + 1) * Ho2, :] = (
            acc2[n * Hs2:n * Hs2 + Ho2, :] + b2_ref[...]).astype(o_ref.dtype)

    # ---- BatchNorm (training-mode batch stats, biased var) + ReLU, f32 ----
    y = o_ref[...].astype(jnp.float32)
    cnt = float(N * Ho2 * Wo2)
    moments_lane = jnp.concatenate(
        [jnp.sum(y, axis=0, keepdims=True),
         jnp.sum(y * y, axis=0, keepdims=True)], axis=0)          # (2, WoC2)
    moments = jnp.dot(moments_lane, sel_ref[...],
                      preferred_element_type=jnp.float32) / cnt    # (2, C2)
    mean = moments[0:1, :]
    var = moments[1:2, :] - mean * mean                            # biased var
    scale = g_ref[...] * jax.lax.rsqrt(var + eps)                  # (1, C2)
    shift = beta_ref[...] - mean * scale
    ss_lane = jnp.dot(jnp.concatenate([scale, shift], axis=0), selt_ref[...],
                      preferred_element_type=jnp.float32)          # (2, WoC2)
    o_ref[...] = jnp.maximum(y * ss_lane[0:1, :] + ss_lane[1:2, :],
                             0.0).astype(o_ref.dtype)


# ----------------------------------------------------------------------------
# Wrapper-side constant preparation (built ONCE per parameter set)
# ----------------------------------------------------------------------------
def _banded_weight(w, w_in, wo, pad, stride=1):
    """w: (KH, KW, Cin, Cout) -> (KH, w_in*Cin, wo*Cout).

    M[kh][wi*Cin+ci, q*Cout+co] = w[kh, wi - q*stride + pad, ci, co] inside the
    valid band, 0 elsewhere (W-padding folded into the zeros of the band)."""
    KH, KW, Cin, Cout = w.shape
    wi = jnp.arange(w_in)
    q = jnp.arange(wo)
    kw = jnp.arange(KW)
    sel = (wi[None, None, :] ==
           (q[None, :, None] * stride + kw[:, None, None] - pad)).astype(w.dtype)
    m = jnp.einsum("kqp,hkic->hpiqc", sel, w)   # (KH, w_in, Cin, wo, Cout)
    return m.reshape(KH, w_in * Cin, wo * Cout)


def prepare_constants(p, H, W, matmul_dtype=jnp.bfloat16):
    """Parameter-only constants: banded conv-as-matmul matrices, lane-tiled
    biases, BN lane<->channel selection matrices.  Hoisted out of the per-step
    forward so they are not rebuilt on the critical path."""
    if p["stride1"] != 1 or p["stride2"] != 1:
        raise NotImplementedError("fused kernel supports stride=1 only")
    KH = p["w1"].shape[0]
    Cin = p["w1"].shape[2]
    C1 = p["w1"].shape[3]
    C2 = p["w2"].shape[3]
    pad = p["padding"]

    Hp1 = H + 2 * pad
    Ho1 = Hp1 - KH + 1
    Wo1 = W + 2 * pad - KH + 1
    Hp2 = Ho1 + 2 * pad
    Ho2 = Hp2 - KH + 1
    Wo2 = Wo1 + 2 * pad - KH + 1
    Hs1 = _round_up(Hp1, 8)    # 8-aligned per-image row stride (sublane aligned)
    Hs2 = _round_up(Hp2, 8)

    m1 = _banded_weight(p["w1"], W, Wo1, pad).astype(matmul_dtype)
    m2 = _banded_weight(p["w2"], Wo1, Wo2, pad).astype(matmul_dtype)
    b1_lane = jnp.tile(p["b1"], Wo1).reshape(1, Wo1 * C1).astype(jnp.float32)
    b2_lane = jnp.tile(p["b2"], Wo2).reshape(1, Wo2 * C2).astype(jnp.float32)
    # lane -> channel selection matrix for BN stats (f32: epilogue stays exact).
    sel = (jnp.arange(Wo2 * C2)[:, None] % C2 ==
           jnp.arange(C2)[None, :]).astype(jnp.float32)       # (Wo2*C2, C2)
    return dict(
        m1=m1, m2=m2, b1=b1_lane, b2=b2_lane, sel=sel, selt=sel.T,
        gamma=p["gamma"].reshape(1, C2).astype(jnp.float32),
        beta=p["beta"].reshape(1, C2).astype(jnp.float32),
        geom=dict(KH=KH, Cin=Cin, C1=C1, C2=C2, pad=pad, H=H, W=W,
                  Ho1=Ho1, Wo1=Wo1, Ho2=Ho2, Wo2=Wo2, Hs1=Hs1, Hs2=Hs2),
        matmul_dtype=matmul_dtype,
    )


def convolution_block_forward(x_nchw, params, consts=None,
                              matmul_dtype=jnp.bfloat16):
    N, Cin, H, W = x_nchw.shape
    if consts is None:
        consts = prepare_constants(params, H, W, matmul_dtype)
    g = consts["geom"]
    assert g["H"] == H and g["W"] == W and g["Cin"] == Cin
    mm_dtype = consts["matmul_dtype"]
    KH, pad = g["KH"], g["pad"]
    Hs1, Ho1, Wo1, C1 = g["Hs1"], g["Ho1"], g["Wo1"], g["C1"]
    Hs2, Ho2, Wo2, C2 = g["Hs2"], g["Ho2"], g["Wo2"], g["C2"]
    WoC1, WoC2 = Wo1 * C1, Wo2 * C2

    # Lane-dense 2-D slab (rows = N*Hs1, lanes = W*Cin) with the conv1
    # H-padding and 8-aligned per-image row stride folded in at the wrapper:
    # 2*pad + alignment extra HBM rows per image, and no in-kernel x->xpad
    # copy or full-slab zero fill.
    x_nhwc = jnp.transpose(x_nchw, (0, 2, 3, 1))
    x_pad = jnp.pad(x_nhwc, ((0, 0), (pad, Hs1 - H - pad), (0, 0), (0, 0)))
    x2d = x_pad.reshape(N * Hs1, W * Cin).astype(mm_dtype)

    kernel = functools.partial(
        _fused_conv_block_kernel, N=N, Hs1=Hs1, Ho1=Ho1, WoC1=WoC1,
        Hs2=Hs2, Ho2=Ho2, Wo2=Wo2, WoC2=WoC2, KH=KH, pad=pad, eps=1e-5)

    out2d = pl.pallas_call(
        kernel,
        out_shape=jax.ShapeDtypeStruct((N * Ho2, WoC2), jnp.float32),
        grid=(1,),
        in_specs=[
            pl.BlockSpec((N * Hs1, W * Cin), lambda i: (0, 0)),
            pl.BlockSpec((KH, W * Cin, WoC1), lambda i: (0, 0, 0)),
            pl.BlockSpec((1, WoC1), lambda i: (0, 0)),
            pl.BlockSpec((KH, WoC1, WoC2), lambda i: (0, 0, 0)),
            pl.BlockSpec((1, WoC2), lambda i: (0, 0)),
            pl.BlockSpec((WoC2, C2), lambda i: (0, 0)),
            pl.BlockSpec((C2, WoC2), lambda i: (0, 0)),
            pl.BlockSpec((1, C2), lambda i: (0, 0)),
            pl.BlockSpec((1, C2), lambda i: (0, 0)),
        ],
        out_specs=pl.BlockSpec((N * Ho2, WoC2), lambda i: (0, 0)),
        scratch_shapes=[
            pltpu.VMEM((N * Hs2, WoC1), mm_dtype),   # H-padded conv2 input slab
        ],
        compiler_params=pltpu.CompilerParams(
            dimension_semantics=("arbitrary",)),
    )(x2d, consts["m1"], consts["b1"], consts["m2"], consts["b2"],
      consts["sel"], consts["selt"], consts["gamma"], consts["beta"])

    y = out2d.reshape(N, Ho2, Wo2, C2).astype(x_nchw.dtype)
    return jnp.transpose(y, (0, 3, 1, 2))                    # NHWC -> NCHW


# ----------------------------------------------------------------------------
# Deterministic parameter init (Conv2d-style uniform init; BN gamma=1, beta=0)
# ----------------------------------------------------------------------------
def init_params(key, in_channels, out_channels, kernel_size, stride, padding):
    k1, k2, k3, k4 = jax.random.split(key, 4)
    c_in1, c_in2 = in_channels
    c_out1, c_out2 = out_channels
    fan1 = float(c_in1 * kernel_size * kernel_size)
    fan2 = float(c_in2 * kernel_size * kernel_size)
    w1 = jax.random.uniform(k1, (kernel_size, kernel_size, c_in1, c_out1),
                            jnp.float32, -1.0, 1.0) / jnp.sqrt(fan1)
    b1 = jax.random.uniform(k2, (c_out1,), jnp.float32, -1.0, 1.0) / jnp.sqrt(fan1)
    w2 = jax.random.uniform(k3, (kernel_size, kernel_size, c_in2, c_out2),
                            jnp.float32, -1.0, 1.0) / jnp.sqrt(fan2)
    b2 = jax.random.uniform(k4, (c_out2,), jnp.float32, -1.0, 1.0) / jnp.sqrt(fan2)
    return dict(
        w1=w1, b1=b1, w2=w2, b2=b2,
        gamma=jnp.ones((c_out2,), jnp.float32),
        beta=jnp.zeros((c_out2,), jnp.float32),
        stride1=stride[0], stride2=stride[1], padding=padding,
    )


# Pure-JAX reference (for correctness check only)
def reference_forward(x_nchw, p):
    x = jnp.transpose(x_nchw, (0, 2, 3, 1))

    def conv(x, w, b, stride, pad):
        y = jax.lax.conv_general_dilated(
            x, w, window_strides=(stride, stride),
            padding=[(pad, pad), (pad, pad)],
            dimension_numbers=("NHWC", "HWIO", "NHWC"))
        return y + b

    x = conv(x, p["w1"], p["b1"], p["stride1"], p["padding"])
    x = conv(x, p["w2"], p["b2"], p["stride2"], p["padding"])
    mean = jnp.mean(x, axis=(0, 1, 2), keepdims=True)
    var = jnp.mean((x - mean) ** 2, axis=(0, 1, 2), keepdims=True)
    x = (x - mean) * jax.lax.rsqrt(var + 1e-5) * p["gamma"] + p["beta"]
    x = jnp.maximum(x, 0.0)
    return jnp.transpose(x, (0, 3, 1, 2))


if __name__ == "__main__":
    # ConvolutionBlock(in_channels=[4, 8], out_channels=[8, 16],
    #                  kernel_size=3, stride=[1, 1], padding=1)
    in_channels = (4, 8)
    out_channels = (8, 16)
    kernel_size = 3
    stride = (1, 1)
    padding = 1

    key = jax.random.PRNGKey(0)
    kp, kx = jax.random.split(key)
    params = init_params(kp, in_channels, out_channels, kernel_size, stride,
                         padding)
    x = jax.random.normal(kx, (2, in_channels[0], 16, 16), jnp.float32)  # NCHW

    ref = reference_forward(x, params)

    # f32 MXU path: strict 1e-4 parity with the f32 reference.
    consts_f32 = prepare_constants(params, 16, 16, matmul_dtype=jnp.float32)
    out_f32 = jax.block_until_ready(
        convolution_block_forward(x, params, consts_f32))
    assert out_f32.shape == (2, out_channels[1], 16, 16), out_f32.shape
    err_f32 = float(jnp.max(jnp.abs(out_f32 - ref)))
    assert err_f32 < 1e-4, f"f32 path max abs err {err_f32}"

    # bf16-in / f32-acc MXU path (native MXU rate on v5e/v6e/v7x); looser
    # tolerance reflects bf16 operand rounding, the BN epilogue stays f32.
    consts_bf16 = prepare_constants(params, 16, 16, matmul_dtype=jnp.bfloat16)
    out = jax.block_until_ready(
        convolution_block_forward(x, params, consts_bf16))
    assert out.shape == (2, out_channels[1], 16, 16), out.shape
    err_bf16 = float(jnp.max(jnp.abs(out - ref)))
    assert err_bf16 < 1e-1, f"bf16 path max abs err {err_bf16}"

    print("KERNEL_OK")
</pallas_src>

<mosaic_0001>
module attributes {stable_mosaic.version = 11 : i64} {
  func.func @_fused_conv_block_kernel(%arg0: i32, %arg1: memref<48x64xf32, #tpu.memory_space<vmem>>, %arg2: memref<3x64x128xf32, #tpu.memory_space<vmem>>, %arg3: memref<1x128xf32, #tpu.memory_space<vmem>>, %arg4: memref<3x128x256xf32, #tpu.memory_space<vmem>>, %arg5: memref<1x256xf32, #tpu.memory_space<vmem>>, %arg6: memref<256x16xf32, #tpu.memory_space<vmem>>, %arg7: memref<16x256xf32, #tpu.memory_space<vmem>>, %arg8: memref<1x16xf32, #tpu.memory_space<vmem>>, %arg9: memref<1x16xf32, #tpu.memory_space<vmem>>, %arg10: memref<32x256xf32, #tpu.memory_space<vmem>>, %arg11: memref<48x128xf32, #tpu.memory_space<vmem>>) attributes {dimension_semantics = [#tpu.dimension_semantics<arbitrary>], iteration_bounds = array<i64: 1>, scalar_prefetch = 0 : i64, scratch_operands = 1 : i64, tpu.core_type = #tpu.core_type<tc>, window_params = [{pipeline_mode = #tpu.pipeline_mode<synchronous>, transform_indices = @transform_0, window_bounds = array<i64: 48, 64>}, {pipeline_mode = #tpu.pipeline_mode<synchronous>, transform_indices = @transform_1, window_bounds = array<i64: 3, 64, 128>}, {pipeline_mode = #tpu.pipeline_mode<synchronous>, transform_indices = @transform_2, window_bounds = array<i64: 1, 128>}, {pipeline_mode = #tpu.pipeline_mode<synchronous>, transform_indices = @transform_3, window_bounds = array<i64: 3, 128, 256>}, {pipeline_mode = #tpu.pipeline_mode<synchronous>, transform_indices = @transform_4, window_bounds = array<i64: 1, 256>}, {pipeline_mode = #tpu.pipeline_mode<synchronous>, transform_indices = @transform_5, window_bounds = array<i64: 256, 16>}, {pipeline_mode = #tpu.pipeline_mode<synchronous>, transform_indices = @transform_6, window_bounds = array<i64: 16, 256>}, {pipeline_mode = #tpu.pipeline_mode<synchronous>, transform_indices = @transform_7, window_bounds = array<i64: 1, 16>}, {pipeline_mode = #tpu.pipeline_mode<synchronous>, transform_indices = @transform_8, window_bounds = array<i64: 1, 16>}, {pipeline_mode = #tpu.pipeline_mode<synchronous>, transform_indices = @transform_9, window_bounds = array<i64: 32, 256>}]} {
    %cst = arith.constant 0.000000e+00 : f32
    %0 = vector.broadcast %cst : f32 to vector<46x128xf32>
    %c0 = arith.constant 0 : index
    %c0_0 = arith.constant 0 : index
    %1 = vector.load %arg1[%c0, %c0_0] : memref<48x64xf32, #tpu.memory_space<vmem>>, vector<46x64xf32>
    %c0_1 = arith.constant 0 : index
    %c0_2 = arith.constant 0 : index
    %c0_3 = arith.constant 0 : index
    %2 = vector.load %arg2[%c0_1, %c0_2, %c0_3] : memref<3x64x128xf32, #tpu.memory_space<vmem>>, vector<1x64x128xf32>
    %3 = vector.shape_cast %2 : vector<1x64x128xf32> to vector<64x128xf32>
    %cst_4 = arith.constant dense<0.000000e+00> : vector<46x128xf32>
    %4 = tpu.matmul %1, %3, %cst_4 {dimension_numbers = #tpu.dot_dimension_numbers<[1], [0], [0], [1], [0, 0, 1, 1], [], []>} : vector<46x64xf32>, vector<64x128xf32>, vector<46x128xf32> -> vector<46x128xf32>
    %5 = arith.addf %0, %4 : vector<46x128xf32>
    %c1 = arith.constant 1 : index
    %c0_5 = arith.constant 0 : index
    %6 = vector.load %arg1[%c1, %c0_5] : memref<48x64xf32, #tpu.memory_space<vmem>>, vector<46x64xf32>
    %c1_6 = arith.constant 1 : index
    %c0_7 = arith.constant 0 : index
    %c0_8 = arith.constant 0 : index
    %7 = vector.load %arg2[%c1_6, %c0_7, %c0_8] : memref<3x64x128xf32, #tpu.memory_space<vmem>>, vector<1x64x128xf32>
    %8 = vector.shape_cast %7 : vector<1x64x128xf32> to vector<64x128xf32>
    %cst_9 = arith.constant dense<0.000000e+00> : vector<46x128xf32>
    %9 = tpu.matmul %6, %8, %cst_9 {dimension_numbers = #tpu.dot_dimension_numbers<[1], [0], [0], [1], [0, 0, 1, 1], [], []>} : vector<46x64xf32>, vector<64x128xf32>, vector<46x128xf32> -> vector<46x128xf32>
    %10 = arith.addf %5, %9 : vector<46x128xf32>
    %c2 = arith.constant 2 : index
    %c0_10 = arith.constant 0 : index
    %11 = vector.load %arg1[%c2, %c0_10] : memref<48x64xf32, #tpu.memory_space<vmem>>, vector<46x64xf32>
    %c2_11 = arith.constant 2 : index
    %c0_12 = arith.constant 0 : index
    %c0_13 = arith.constant 0 : index
    %12 = vector.load %arg2[%c2_11, %c0_12, %c0_13] : memref<3x64x128xf32, #tpu.memory_space<vmem>>, vector<1x64x128xf32>
    %13 = vector.shape_cast %12 : vector<1x64x128xf32> to vector<64x128xf32>
    %cst_14 = arith.constant dense<0.000000e+00> : vector<46x128xf32>
    %14 = tpu.matmul %11, %13, %cst_14 {dimension_numbers = #tpu.dot_dimension_numbers<[1], [0], [0], [1], [0, 0, 1, 1], [], []>} : vector<46x64xf32>, vector<64x128xf32>, vector<46x128xf32> -> vector<46x128xf32>
    %15 = arith.addf %10, %14 : vector<46x128xf32>
    %cst_15 = arith.constant 0.000000e+00 : f32
    %16 = vector.broadcast %cst_15 : f32 to vector<1x128xf32>
    %17 = vector.extract_strided_slice %15 {offsets = [0, 0], sizes = [16, 128], strides = [1, 1]} : vector<46x128xf32> to vector<16x128xf32>
    %c0_16 = arith.constant 0 : index
    %c0_17 = arith.constant 0 : index
    %18 = vector.load %arg3[%c0_16, %c0_17] : memref<1x128xf32, #tpu.memory_space<vmem>>, vector<1x128xf32>
    %19 = vector.broadcast %18 : vector<1x128xf32> to vector<16x128xf32>
    %20 = arith.addf %17, %19 : vector<16x128xf32>
    %21 = tpu.concatenate %16, %20, %16 in 0 : vector<1x128xf32>, vector<16x128xf32>, vector<1x128xf32> -> vector<18x128xf32>
    %c0_18 = arith.constant 0 : index
    %c0_19 = arith.constant 0 : index
    %22 = vector.load %arg11[%c0_18, %c0_19] : memref<48x128xf32, #tpu.memory_space<vmem>>, vector<18x128xf32>
    tpu.vector_store %arg11[%c0_18, %c0_19], %21 {strides = array<i32>} : memref<48x128xf32, #tpu.memory_space<vmem>>, vector<18x128xf32>,
    %23 = vector.extract_strided_slice %15 {offsets = [24, 0], sizes = [16, 128], strides = [1, 1]} : vector<46x128xf32> to vector<16x128xf32>
    %c0_20 = arith.constant 0 : index
    %c0_21 = arith.constant 0 : index
    %24 = vector.load %arg3[%c0_20, %c0_21] : memref<1x128xf32, #tpu.memory_space<vmem>>, vector<1x128xf32>
    %25 = vector.broadcast %24 : vector<1x128xf32> to vector<16x128xf32>
    %26 = arith.addf %23, %25 : vector<16x128xf32>
    %27 = tpu.concatenate %16, %26, %16 in 0 : vector<1x128xf32>, vector<16x128xf32>, vector<1x128xf32> -> vector<18x128xf32>
    %c24 = arith.constant 24 : index
    %c0_22 = arith.constant 0 : index
    %28 = vector.load %arg11[%c24, %c0_22] : memref<48x128xf32, #tpu.memory_space<vmem>>, vector<18x128xf32>
    tpu.vector_store %arg11[%c24, %c0_22], %27 {strides = array<i32>} : memref<48x128xf32, #tpu.memory_space<vmem>>, vector<18x128xf32>,
    %cst_23 = arith.constant 0.000000e+00 : f32
    %29 = vector.broadcast %cst_23 : f32 to vector<46x256xf32>
    %c0_24 = arith.constant 0 : index
    %c0_25 = arith.constant 0 : index
    %30 = vector.load %arg11[%c0_24, %c0_25] : memref<48x128xf32, #tpu.memory_space<vmem>>, vector<46x128xf32>
    %c0_26 = arith.constant 0 : index
    %c0_27 = arith.constant 0 : index
    %c0_28 = arith.constant 0 : index
    %31 = vector.load %arg4[%c0_26, %c0_27, %c0_28] : memref<3x128x256xf32, #tpu.memory_space<vmem>>, vector<1x128x256xf32>
    %32 = vector.shape_cast %31 : vector<1x128x256xf32> to vector<128x256xf32>
    %cst_29 = arith.constant dense<0.000000e+00> : vector<46x256xf32>
    %33 = tpu.matmul %30, %32, %cst_29 {dimension_numbers = #tpu.dot_dimension_numbers<[1], [0], [0], [1], [0, 0, 1, 1], [], []>} : vector<46x128xf32>, vector<128x256xf32>, vector<46x256xf32> -> vector<46x256xf32>
    %34 = arith.addf %29, %33 : vector<46x256xf32>
    %c1_30 = arith.constant 1 : index
    %c0_31 = arith.constant 0 : index
    %35 = vector.load %arg11[%c1_30, %c0_31] : memref<48x128xf32, #tpu.memory_space<vmem>>, vector<46x128xf32>
    %c1_32 = arith.constant 1 : index
    %c0_33 = arith.constant 0 : index
    %c0_34 = arith.constant 0 : index
    %36 = vector.load %arg4[%c1_32, %c0_33, %c0_34] : memref<3x128x256xf32, #tpu.memory_space<vmem>>, vector<1x128x256xf32>
    %37 = vector.shape_cast %36 : vector<1x128x256xf32> to vector<128x256xf32>
    %cst_35 = arith.constant dense<0.000000e+00> : vector<46x256xf32>
    %38 = tpu.matmul %35, %37, %cst_35 {dimension_numbers = #tpu.dot_dimension_numbers<[1], [0], [0], [1], [0, 0, 1, 1], [], []>} : vector<46x128xf32>, vector<128x256xf32>, vector<46x256xf32> -> vector<46x256xf32>
    %39 = arith.addf %34, %38 : vector<46x256xf32>
    %c2_36 = arith.constant 2 : index
    %c0_37 = arith.constant 0 : index
    %40 = vector.load %arg11[%c2_36, %c0_37] : memref<48x128xf32, #tpu.memory_space<vmem>>, vector<46x128xf32>
    %c2_38 = arith.constant 2 : index
    %c0_39 = arith.constant 0 : index
    %c0_40 = arith.constant 0 : index
    %41 = vector.load %arg4[%c2_38, %c0_39, %c0_40] : memref<3x128x256xf32, #tpu.memory_space<vmem>>, vector<1x128x256xf32>
    %42 = vector.shape_cast %41 : vector<1x128x256xf32> to vector<128x256xf32>
    %cst_41 = arith.constant dense<0.000000e+00> : vector<46x256xf32>
    %43 = tpu.matmul %40, %42, %cst_41 {dimension_numbers = #tpu.dot_dimension_numbers<[1], [0], [0], [1], [0, 0, 1, 1], [], []>} : vector<46x128xf32>, vector<128x256xf32>, vector<46x256xf32> -> vector<46x256xf32>
    %44 = arith.addf %39, %43 : vector<46x256xf32>
    %45 = vector.extract_strided_slice %44 {offsets = [0, 0], sizes = [16, 256], strides = [1, 1]} : vector<46x256xf32> to vector<16x256xf32>
    %c0_42 = arith.constant 0 : index
    %c0_43 = arith.constant 0 : index
    %46 = vector.load %arg5[%c0_42, %c0_43] : memref<1x256xf32, #tpu.memory_space<vmem>>, vector<1x256xf32>
    %47 = vector.broadcast %46 : vector<1x256xf32> to vector<16x256xf32>
    %48 = arith.addf %45, %47 : vector<16x256xf32>
    %c0_44 = arith.constant 0 : index
    %c0_45 = arith.constant 0 : index
    %49 = vector.load %arg10[%c0_44, %c0_45] : memref<32x256xf32, #tpu.memory_space<vmem>>, vector<16x256xf32>
    tpu.vector_store %arg10[%c0_44, %c0_45], %48 {strides = array<i32>} : memref<32x256xf32, #tpu.memory_space<vmem>>, vector<16x256xf32>,
    %50 = vector.extract_strided_slice %44 {offsets = [24, 0], sizes = [16, 256], strides = [1, 1]} : vector<46x256xf32> to vector<16x256xf32>
    %c0_46 = arith.constant 0 : index
    %c0_47 = arith.constant 0 : index
    %51 = vector.load %arg5[%c0_46, %c0_47] : memref<1x256xf32, #tpu.memory_space<vmem>>, vector<1x256xf32>
    %52 = vector.broadcast %51 : vector<1x256xf32> to vector<16x256xf32>
    %53 = arith.addf %50, %52 : vector<16x256xf32>
    %c16 = arith.constant 16 : index
    %c0_48 = arith.constant 0 : index
    %54 = vector.load %arg10[%c16, %c0_48] : memref<32x256xf32, #tpu.memory_space<vmem>>, vector<16x256xf32>
    tpu.vector_store %arg10[%c16, %c0_48], %53 {strides = array<i32>} : memref<32x256xf32, #tpu.memory_space<vmem>>, vector<16x256xf32>,
    %c0_49 = arith.constant 0 : index
    %c0_50 = arith.constant 0 : index
    %55 = vector.load %arg10[%c0_49, %c0_50] : memref<32x256xf32, #tpu.memory_space<vmem>>, vector<32x256xf32>
    %cst_51 = arith.constant dense<0.000000e+00> : vector<256xf32>
    %56 = vector.multi_reduction <add>, %55, %cst_51 [0] : vector<32x256xf32> to vector<256xf32>
    %57 = vector.shape_cast %56 : vector<256xf32> to vector<1x256xf32>
    %58 = arith.mulf %55, %55 : vector<32x256xf32>
    %cst_52 = arith.constant dense<0.000000e+00> : vector<256xf32>
    %59 = vector.multi_reduction <add>, %58, %cst_52 [0] : vector<32x256xf32> to vector<256xf32>
    %60 = vector.shape_cast %59 : vector<256xf32> to vector<1x256xf32>
    %61 = tpu.concatenate %57, %60 in 0 : vector<1x256xf32>, vector<1x256xf32> -> vector<2x256xf32>
    %c0_53 = arith.constant 0 : index
    %c0_54 = arith.constant 0 : index
    %62 = vector.load %arg6[%c0_53, %c0_54] : memref<256x16xf32, #tpu.memory_space<vmem>>, vector<256x16xf32>
    %cst_55 = arith.constant dense<0.000000e+00> : vector<2x16xf32>
    %63 = tpu.matmul %61, %62, %cst_55 {dimension_numbers = #tpu.dot_dimension_numbers<[1], [0], [0], [1], [0, 0, 1, 1], [], []>} : vector<2x256xf32>, vector<256x16xf32>, vector<2x16xf32> -> vector<2x16xf32>
    %cst_56 = arith.constant 5.120000e+02 : f32
    %64 = vector.broadcast %cst_56 : f32 to vector<2x16xf32>
    %65 = arith.divf %63, %64 : vector<2x16xf32>
    %66 = vector.extract_strided_slice %65 {offsets = [0, 0], sizes = [1, 16], strides = [1, 1]} : vector<2x16xf32> to vector<1x16xf32>
    %67 = vector.extract_strided_slice %65 {offsets = [1, 0], sizes = [1, 16], strides = [1, 1]} : vector<2x16xf32> to vector<1x16xf32>
    %68 = arith.mulf %66, %66 : vector<1x16xf32>
    %69 = arith.subf %67, %68 : vector<1x16xf32>
    %c0_57 = arith.constant 0 : index
    %c0_58 = arith.constant 0 : index
    %70 = vector.load %arg8[%c0_57, %c0_58] : memref<1x16xf32, #tpu.memory_space<vmem>>, vector<1x16xf32>
    %cst_59 = arith.constant 9.99999974E-6 : f32
    %71 = vector.broadcast %cst_59 : f32 to vector<1x16xf32>
    %72 = arith.addf %69, %71 : vector<1x16xf32>
    %73 = math.rsqrt %72 : vector<1x16xf32>
    %74 = arith.mulf %70, %73 : vector<1x16xf32>
    %c0_60 = arith.constant 0 : index
    %c0_61 = arith.constant 0 : index
    %75 = vector.load %arg9[%c0_60, %c0_61] : memref<1x16xf32, #tpu.memory_space<vmem>>, vector<1x16xf32>
    %76 = arith.mulf %66, %74 : vector<1x16xf32>
    %77 = arith.subf %75, %76 : vector<1x16xf32>
    %78 = tpu.concatenate %74, %77 in 0 : vector<1x16xf32>, vector<1x16xf32> -> vector<2x16xf32>
    %c0_62 = arith.constant 0 : index
    %c0_63 = arith.constant 0 : index
    %79 = vector.load %arg7[%c0_62, %c0_63] : memref<16x256xf32, #tpu.memory_space<vmem>>, vector<16x256xf32>
    %cst_64 = arith.constant dense<0.000000e+00> : vector<2x256xf32>
    %80 = tpu.matmul %78, %79, %cst_64 {dimension_numbers = #tpu.dot_dimension_numbers<[1], [0], [0], [1], [0, 0, 1, 1], [], []>} : vector<2x16xf32>, vector<16x256xf32>, vector<2x256xf32> -> vector<2x256xf32>
    %81 = vector.extract_strided_slice %80 {offsets = [0, 0], sizes = [1, 256], strides = [1, 1]} : vector<2x256xf32> to vector<1x256xf32>
    %82 = vector.broadcast %81 : vector<1x256xf32> to vector<32x256xf32>
    %83 = arith.mulf %55, %82 : vector<32x256xf32>
    %84 = vector.extract_strided_slice %80 {offsets = [1, 0], sizes = [1, 256], strides = [1, 1]} : vector<2x256xf32> to vector<1x256xf32>
    %85 = vector.broadcast %84 : vector<1x256xf32> to vector<32x256xf32>
    %86 = arith.addf %83, %85 : vector<32x256xf32>
    %cst_65 = arith.constant 0.000000e+00 : f32
    %87 = vector.broadcast %cst_65 : f32 to vector<32x256xf32>
    %88 = arith.maximumf %86, %87 : vector<32x256xf32>
    %c0_66 = arith.constant 0 : index
    %c0_67 = arith.constant 0 : index
    %89 = vector.load %arg10[%c0_66, %c0_67] : memref<32x256xf32, #tpu.memory_space<vmem>>, vector<32x256xf32>
    tpu.vector_store %arg10[%c0_66, %c0_67], %88 {strides = array<i32>} : memref<32x256xf32, #tpu.memory_space<vmem>>, vector<32x256xf32>,
    return
  }
  func.func @transform_0(%arg0: i32) -> (i32, i32) {
    %c0_i32 = arith.constant 0 : i32
    %c0_i32_0 = arith.constant 0 : i32
    %c0_i32_1 = arith.constant 0 : i32
    return %c0_i32, %c0_i32_0 : i32, i32
  }
  func.func @transform_1(%arg0: i32) -> (i32, i32, i32) {
    %c0_i32 = arith.constant 0 : i32
    %c0_i32_0 = arith.constant 0 : i32
    %c0_i32_1 = arith.constant 0 : i32
    %c0_i32_2 = arith.constant 0 : i32
    return %c0_i32, %c0_i32_0, %c0_i32_1 : i32, i32, i32
  }
  func.func @transform_2(%arg0: i32) -> (i32, i32) {
    %c0_i32 = arith.constant 0 : i32
    %c0_i32_0 = arith.constant 0 : i32
    %c0_i32_1 = arith.constant 0 : i32
    return %c0_i32, %c0_i32_0 : i32, i32
  }
  func.func @transform_3(%arg0: i32) -> (i32, i32, i32) {
    %c0_i32 = arith.constant 0 : i32
    %c0_i32_0 = arith.constant 0 : i32
    %c0_i32_1 = arith.constant 0 : i32
    %c0_i32_2 = arith.constant 0 : i32
    return %c0_i32, %c0_i32_0, %c0_i32_1 : i32, i32, i32
  }
  func.func @transform_4(%arg0: i32) -> (i32, i32) {
    %c0_i32 = arith.constant 0 : i32
    %c0_i32_0 = arith.constant 0 : i32
    %c0_i32_1 = arith.constant 0 : i32
    return %c0_i32, %c0_i32_0 : i32, i32
  }
  func.func @transform_5(%arg0: i32) -> (i32, i32) {
    %c0_i32 = arith.constant 0 : i32
    %c0_i32_0 = arith.constant 0 : i32
    %c0_i32_1 = arith.constant 0 : i32
    return %c0_i32, %c0_i32_0 : i32, i32
  }
  func.func @transform_6(%arg0: i32) -> (i32, i32) {
    %c0_i32 = arith.constant 0 : i32
    %c0_i32_0 = arith.constant 0 : i32
    %c0_i32_1 = arith.constant 0 : i32
    return %c0_i32, %c0_i32_0 : i32, i32
  }
  func.func @transform_7(%arg0: i32) -> (i32, i32) {
    %c0_i32 = arith.constant 0 : i32
    %c0_i32_0 = arith.constant 0 : i32
    %c0_i32_1 = arith.constant 0 : i32
    return %c0_i32, %c0_i32_0 : i32, i32
  }
  func.func @transform_8(%arg0: i32) -> (i32, i32) {
    %c0_i32 = arith.constant 0 : i32
    %c0_i32_0 = arith.constant 0 : i32
    %c0_i32_1 = arith.constant 0 : i32
    return %c0_i32, %c0_i32_0 : i32, i32
  }
  func.func @transform_9(%arg0: i32) -> (i32, i32) {
    %c0_i32 = arith.constant 0 : i32
    %c0_i32_0 = arith.constant 0 : i32
    %c0_i32_1 = arith.constant 0 : i32
    return %c0_i32, %c0_i32_0 : i32, i32
  }
}

</mosaic_0001>

<llo_original>
// kernel: tpu_custom_call.1
$region0: #{tpu_custom_call.1}
  #allocation0 [shape = 'u32[]', space=smem, size = 0x4, offset = 0x4, fixed_abs, tag = 'smem constant byte address 0x4 - core index']
  #allocation1 [shape = 'u32[72,128]{1,0:T(1,128)}', space=vmem, size = 0x9000, scoped, tag = 'internal scratch']
  #allocation2 [shape = 'f32[48,128]{1,0:T(8,128)}', space=vmem, size = 0x6000, scoped, tag = 'scratch operand']
  %s0 = inlined_call_operand.vmem [shape: f32[48,64], index: 0, kind: input, shape index: {}]
  %s1 = inlined_call_operand.vmem [shape: f32[3,64,128], index: 1, kind: input, shape index: {}]
  %s2 = inlined_call_operand.vmem [shape: f32[1,128], index: 2, kind: input, shape index: {}]
  %s3 = inlined_call_operand.hbm [shape: f32[3,128,256], index: 3, kind: input, shape index: {}]
  %s4 = inlined_call_operand.vmem [shape: f32[1,256], index: 4, kind: input, shape index: {}]
  %s5 = inlined_call_operand.vmem [shape: f32[256,16], index: 5, kind: input, shape index: {}]
  %s6 = inlined_call_operand.vmem [shape: f32[16,256], index: 6, kind: input, shape index: {}]
  %s7 = inlined_call_operand.vmem [shape: f32[1,16], index: 7, kind: input, shape index: {}]
  %s8 = inlined_call_operand.vmem [shape: f32[1,16], index: 8, kind: input, shape index: {}]
  %s9 = inlined_call_operand.hbm [shape: f32[32,256], index: 9, kind: output, shape index: {}]
  %s10 = sld [smem:[#allocation0]]
  $region50: #{tpu_custom_call.1} parent=0
    _
  %s12 = ssub.s32 1, %s10
  %s13 = scalar_select 0, %s12, %s10
  $region1: #{tpu_custom_call.1} parent=0
    #allocation3 [shape = 'u8[393216]{0}', space=vmem, size = 0x60000, scoped, tag = 'input window, operand 3, single buffered']
    #allocation4 [shape = 's32[1]{0}', space=sflag, size = 0x4, scoped, tag = 'scoped memory for tpu_custom_call.1']
    #allocation5 [shape = 's32[1]{0}', space=sflag, size = 0x4, scoped, tag = 'scoped memory for tpu_custom_call.1']
    #allocation6 [shape = 'u8[32768]{0}', space=vmem, size = 0x8000, scoped, tag = 'output window, operand 0, single buffered']
    %14 = vsyncpa [#allocation4], 0
    %15 = vsyncpa [#allocation5], 0
    // Predicated region
    $region2: #{tpu_custom_call.1} parent=1 // pred_check
      _
    $region3: #{tpu_custom_call.1} parent=1 // pred_check_branch
      %17 = sbr.rel (0) target = $region5
    $region4: #{tpu_custom_call.1} parent=1 // pred_region
      _
    $region5: #{tpu_custom_call.1} parent=1 // pred_fallthru
      _
    // Predicated region
    $region6: #{tpu_custom_call.1} parent=1 // pred_check
      _
    $region7: #{tpu_custom_call.1} parent=1 // pred_check_branch
      %19 = sbr.rel (0) target = $region9
    $region8: #{tpu_custom_call.1} parent=1 // pred_region
      _
    $region9: #{tpu_custom_call.1} parent=1 // pred_fallthru
      _
    // Predicated region
    $region10: #{tpu_custom_call.1} parent=1 // pred_check
      _
    $region11: #{tpu_custom_call.1} parent=1 // pred_check_branch
      %21 = sbr.rel (0) target = $region13
    $region12: #{tpu_custom_call.1} parent=1 // pred_region
      _
    $region13: #{tpu_custom_call.1} parent=1 // pred_fallthru
      _
    // Predicated region
    $region14: #{tpu_custom_call.1} parent=1 // pred_check
      _
    $region15: #{tpu_custom_call.1} parent=1 // pred_check_branch
      %23 = sbr.rel (0) target = $region17
    $region16: #{tpu_custom_call.1} parent=1 // pred_region
      %25 = vsyncadd [#allocation4], 0
      %s26 = sshll.u32 %s3, 4
      %s27 = int_to_ptr.hbm [resolvable:$true] %s26
      %s28 = sshll.u32 [#allocation3], 4
      %s29 = int_to_ptr.vmem [resolvable:$true] %s28
      %34 = dma.hbm_to_vmem [thread:$0]  %s27, 12288, %s29, [#allocation4], 256, 256, 16
    $region17: #{tpu_custom_call.1} parent=1 // pred_fallthru
      _
    // Predicated region
    $region18: #{tpu_custom_call.1} parent=1 // pred_check
      _
    $region19: #{tpu_custom_call.1} parent=1 // pred_check_branch
      %36 = sbr.rel (0) target = $region21
    $region20: #{tpu_custom_call.1} parent=1 // pred_region
      _
    $region21: #{tpu_custom_call.1} parent=1 // pred_fallthru
      _
    // Predicated region
    $region22: #{tpu_custom_call.1} parent=1 // pred_check
      _
    $region23: #{tpu_custom_call.1} parent=1 // pred_check_branch
      %38 = sbr.rel (0) target = $region25
    $region24: #{tpu_custom_call.1} parent=1 // pred_region
      _
    $region25: #{tpu_custom_call.1} parent=1 // pred_fallthru
      _
    // Predicated region
    $region26: #{tpu_custom_call.1} parent=1 // pred_check
      _
    $region27: #{tpu_custom_call.1} parent=1 // pred_check_branch
      %40 = sbr.rel (0) target = $region29
    $region28: #{tpu_custom_call.1} parent=1 // pred_region
      _
    $region29: #{tpu_custom_call.1} parent=1 // pred_fallthru
      _
    // Predicated region
    $region30: #{tpu_custom_call.1} parent=1 // pred_check
      _
    $region31: #{tpu_custom_call.1} parent=1 // pred_check_branch
      %42 = sbr.rel (0) target = $region33
    $region32: #{tpu_custom_call.1} parent=1 // pred_region
      _
    $region33: #{tpu_custom_call.1} parent=1 // pred_fallthru
      _
    // Predicated region
    $region34: #{tpu_custom_call.1} parent=1 // pred_check
      _
    $region35: #{tpu_custom_call.1} parent=1 // pred_check_branch
      %44 = sbr.rel (0) target = $region37
    $region36: #{tpu_custom_call.1} parent=1 // pred_region
      _
    $region37: #{tpu_custom_call.1} parent=1 // pred_fallthru
      _
    // Predicated region
    $region38: #{tpu_custom_call.1} parent=1 // pred_check
      _
    $region39: #{tpu_custom_call.1} parent=1 // pred_check_branch
      %46 = sbr.rel (0) target = $region41
    $region40: #{tpu_custom_call.1} parent=1 // pred_region
      %48 = dma.done [#allocation4], 12288
    $region41: #{tpu_custom_call.1} parent=1 // pred_fallthru
      _
    %v49 = vld [vmem:[%s0] sm:$0xff]
    %v50 = vld [vmem:[%s0 + $0x8] sm:$0xff]
    %v51 = vld [vmem:[%s0 + $0x10] sm:$0xff]
    %v52 = vld [vmem:[%s0 + $0x18] sm:$0xff]
    %v53 = vld [vmem:[%s0 + $0x20] sm:$0xff]
    %v54 = vld [vmem:[%s0 + $0x28] sm:$0x3f]
    %v55 = vld [vmem:[%s1] sm:$0xff]
    %v56 = vld [vmem:[%s1 + $0x8] sm:$0xff]
    %v57 = vld [vmem:[%s1 + $0x10] sm:$0xff]
    %v58 = vld [vmem:[%s1 + $0x18] sm:$0xff]
    %v59 = vld [vmem:[%s1 + $0x20] sm:$0xff]
    %v60 = vld [vmem:[%s1 + $0x28] sm:$0xff]
    %v61 = vld [vmem:[%s1 + $0x30] sm:$0xff]
    %v62 = vld [vmem:[%s1 + $0x38] sm:$0xff]
    %v63 = vld [vmem:[%s0 + $0x1] sm:$0xff]
    %v64 = vld [vmem:[%s0 + $0x9] sm:$0xff]
    %v65 = vld [vmem:[%s0 + $0x11] sm:$0xff]
    %v66 = vld [vmem:[%s0 + $0x19] sm:$0xff]
    %v67 = vld [vmem:[%s0 + $0x21] sm:$0xff]
    %v68 = vld [vmem:[%s0 + $0x29] sm:$0x3f]
    %s69 = scalar_lea.vmem %s1, 64
    %v70 = vld [vmem:[%s69] sm:$0xff]
    %v71 = vld [vmem:[%s69 + $0x8] sm:$0xff]
    %v72 = vld [vmem:[%s69 + $0x10] sm:$0xff]
    %v73 = vld [vmem:[%s69 + $0x18] sm:$0xff]
    %v74 = vld [vmem:[%s69 + $0x20] sm:$0xff]
    %v75 = vld [vmem:[%s69 + $0x28] sm:$0xff]
    %v76 = vld [vmem:[%s69 + $0x30] sm:$0xff]
    %v77 = vld [vmem:[%s69 + $0x38] sm:$0xff]
    %vm78 = vcmask 523264
    %v80 = vsel %vm78, %v63, 0
    %v83 = vsel %vm78, %v64, 0
    %v86 = vsel %vm78, %v65, 0
    %v89 = vsel %vm78, %v66, 0
    %v92 = vsel %vm78, %v67, 0
    %v95 = vsel %vm78, %v68, 0
    %97 = vmatpush.msra.mxu0 0.0
    %98 = vmatpush.msra.mxu0 0.0
    %99 = vmatpush.msra.mxu0 0.0
    %100 = vmatpush.msra.mxu0 0.0
    %101 = vmatpush.msra.mxu0 0.0
    %102 = vmatpush.msra.mxu0 0.0
    %103 = vmatpush.msra.mxu0 0.0
    %104 = vmatpush.msra.mxu0 0.0
    %105 = vmatpush.msra.mxu0 %v77
    %106 = vmatpush.msra.mxu0 %v76
    %107 = vmatpush.msra.mxu0 %v75
    %108 = vmatpush.msra.mxu0 %v74
    %109 = vmatpush.msra.mxu0 %v73
    %110 = vmatpush.msra.mxu0 %v72
    %111 = vmatpush.msra.mxu0 %v71
    %112 = vmatpush.msra.mxu0 %v70
    %113 = vmatmul.f32.gmra.mxu0 %v80
    %v114 = vpop.f32.mrf.mxu0
    %v115 = vadd.f32 0.0, %v114
    %116 = vmatmul.f32.gmra.mxu0 %v83
    %v117 = vpop.f32.mrf.mxu0
    %v118 = vadd.f32 0.0, %v117
    %119 = vmatmul.f32.gmra.mxu0 %v86
    %v120 = vpop.f32.mrf.mxu0
    %121 = vmatmul.f32.gmra.mxu0 %v89
    %v122 = vpop.f32.mrf.mxu0
    %v123 = vadd.f32 0.0, %v122
    %124 = vmatmul.f32.gmra.mxu0 %v92
    %v125 = vpop.f32.mrf.mxu0
    %v126 = vadd.f32 0.0, %v125
    %127 = vmatmul.f32.gmra.mxu0 %v95
    %v128 = vpop.f32.mrf.mxu0
    %129 = vdwg.mxu0
    %v131 = vsel %vm78, %v49, 0
    %v134 = vsel %vm78, %v50, 0
    %v137 = vsel %vm78, %v51, 0
    %v140 = vsel %vm78, %v52, 0
    %v143 = vsel %vm78, %v53, 0
    %v146 = vsel %vm78, %v54, 0
    %148 = vmatpush.msra.mxu0 0.0
    %149 = vmatpush.msra.mxu0 0.0
    %150 = vmatpush.msra.mxu0 0.0
    %151 = vmatpush.msra.mxu0 0.0
    %152 = vmatpush.msra.mxu0 0.0
    %153 = vmatpush.msra.mxu0 0.0
    %154 = vmatpush.msra.mxu0 0.0
    %155 = vmatpush.msra.mxu0 0.0
    %156 = vmatpush.msra.mxu0 %v62
    %157 = vmatpush.msra.mxu0 %v61
    %158 = vmatpush.msra.mxu0 %v60
    %159 = vmatpush.msra.mxu0 %v59
    %160 = vmatpush.msra.mxu0 %v58
    %161 = vmatpush.msra.mxu0 %v57
    %162 = vmatpush.msra.mxu0 %v56
    %163 = vmatpush.msra.mxu0 %v55
    %164 = vmatmul.f32.gmra.mxu0 %v131
    %v165 = vpop.f32.mrf.mxu0
    %v166 = vadd.f32 %v115, %v165
    %167 = vmatmul.f32.gmra.mxu0 %v134
    %v168 = vpop.f32.mrf.mxu0
    %v169 = vadd.f32 %v118, %v168
    %170 = vmatmul.f32.gmra.mxu0 %v137
    %v171 = vpop.f32.mrf.mxu0
    %172 = vmatmul.f32.gmra.mxu0 %v140
    %v173 = vpop.f32.mrf.mxu0
    %v174 = vadd.f32 %v123, %v173
    %175 = vmatmul.f32.gmra.mxu0 %v143
    %v176 = vpop.f32.mrf.mxu0
    %v177 = vadd.f32 %v126, %v176
    %178 = vmatmul.f32.gmra.mxu0 %v146
    %v179 = vpop.f32.mrf.mxu0
    %180 = vdwg.mxu0
    %v181 = vld [vmem:[%s0 + $0x2] sm:$0xff]
    %v182 = vld [vmem:[%s0 + $0xa] sm:$0xff]
    %v183 = vld [vmem:[%s0 + $0x12] sm:$0xff]
    %v184 = vld [vmem:[%s0 + $0x1a] sm:$0xff]
    %v185 = vld [vmem:[%s0 + $0x22] sm:$0xff]
    %v186 = vld [vmem:[%s0 + $0x2a] sm:$0x3f]
    %s187 = scalar_lea.vmem %s1, 128
    %v188 = vld [vmem:[%s187] sm:$0xff]
    %v189 = vld [vmem:[%s187 + $0x8] sm:$0xff]
    %v190 = vld [vmem:[%s187 + $0x10] sm:$0xff]
    %v191 = vld [vmem:[%s187 + $0x18] sm:$0xff]
    %v192 = vld [vmem:[%s187 + $0x20] sm:$0xff]
    %v193 = vld [vmem:[%s187 + $0x28] sm:$0xff]
    %v194 = vld [vmem:[%s187 + $0x30] sm:$0xff]
    %v195 = vld [vmem:[%s187 + $0x38] sm:$0xff]
    %v197 = vsel %vm78, %v181, 0
    %v200 = vsel %vm78, %v182, 0
    %v203 = vsel %vm78, %v183, 0
    %v206 = vsel %vm78, %v184, 0
    %v209 = vsel %vm78, %v185, 0
    %v212 = vsel %vm78, %v186, 0
    %214 = vmatpush.msra.mxu0 0.0
    %215 = vmatpush.msra.mxu0 0.0
    %216 = vmatpush.msra.mxu0 0.0
    %217 = vmatpush.msra.mxu0 0.0
    %218 = vmatpush.msra.mxu0 0.0
    %219 = vmatpush.msra.mxu0 0.0
    %220 = vmatpush.msra.mxu0 0.0
    %221 = vmatpush.msra.mxu0 0.0
    %222 = vmatpush.msra.mxu0 %v195
    %223 = vmatpush.msra.mxu0 %v194
    %224 = vmatpush.msra.mxu0 %v193
    %225 = vmatpush.msra.mxu0 %v192
    %226 = vmatpush.msra.mxu0 %v191
    %227 = vmatpush.msra.mxu0 %v190
    %228 = vmatpush.msra.mxu0 %v189
    %229 = vmatpush.msra.mxu0 %v188
    %230 = vmatmul.f32.gmra.mxu0 %v197
    %v231 = vpop.f32.mrf.mxu0
    %v232 = vadd.f32 0.0, %v231
    %233 = vmatmul.f32.gmra.mxu0 %v200
    %v234 = vpop.f32.mrf.mxu0
    %v235 = vadd.f32 0.0, %v234
    %236 = vmatmul.f32.gmra.mxu0 %v203
    %v237 = vpop.f32.mrf.mxu0
    %238 = vmatmul.f32.gmra.mxu0 %v206
    %v239 = vpop.f32.mrf.mxu0
    %v240 = vadd.f32 0.0, %v239
    %241 = vmatmul.f32.gmra.mxu0 %v209
    %v242 = vpop.f32.mrf.mxu0
    %v243 = vadd.f32 0.0, %v242
    %244 = vmatmul.f32.gmra.mxu0 %v212
    %v245 = vpop.f32.mrf.mxu0
    %246 = vdwg.mxu0
    %v247 = vadd.f32 %v166, %v232
    %v248 = vadd.f32 %v169, %v235
    %v249 = vadd.f32 %v174, %v240
    %v250 = vadd.f32 %v177, %v243
    %v251 = vld [vmem:[%s2] sm:$0x1]
    %v253 = vperm.slane %v251, 0
    %v255 = vadd.f32 %v247, %v253
    %v256 = vadd.f32 %v248, %v253
    %vm259 = vcmask 1040384
    %v260 = vrot.slane %v255, 7
    %v261 = vrot.slane %v256, 7
    %v262 = vsel %vm259, %v260, %v261
    %v266 = vsel %vm259, 0.0, %v260
    %v267 = vsel %vm259, %v261, 0.0
    %268 = vst [vmem:[#allocation2] sm:$0xff] %v266
    %269 = vst [vmem:[#allocation2 + $0x8] sm:$0xff] %v262
    %270 = vst [vmem:[#allocation2 + $0x10] sm:$0x3] %v267
    %v271 = vld [vmem:[%s2] sm:$0x1]
    %v273 = vperm.slane %v271, 0
    %v275 = vadd.f32 %v249, %v273
    %v276 = vadd.f32 %v250, %v273
    %v279 = vrot.slane %v275, 7
    %v280 = vrot.slane %v276, 7
    %v281 = vsel %vm259, %v279, %v280
    %v285 = vsel %vm259, 0.0, %v279
    %v286 = vsel %vm259, %v280, 0.0
    %287 = vst [vmem:[#allocation2 + $0x18] sm:$0xff] %v285
    %288 = vst [vmem:[#allocation2 + $0x20] sm:$0xff] %v281
    %289 = vst [vmem:[#allocation2 + $0x28] sm:$0x3] %v286
    %v290 = vld [vmem:[#allocation2] sm:$0xff]
    %v291 = vld [vmem:[#allocation2 + $0x8] sm:$0xff]
    %v292 = vld [vmem:[#allocation2 + $0x10] sm:$0xff]
    %v293 = vld [vmem:[#allocation2 + $0x18] sm:$0xff]
    %v294 = vld [vmem:[#allocation2 + $0x20] sm:$0xff]
    %v295 = vld [vmem:[#allocation2 + $0x28] sm:$0x3f]
    %v296 = vld [vmem:[#allocation3] sm:$0xff]
    %v297 = vld [vmem:[#allocation3 + $0x8] sm:$0xff]
    %v298 = vld [vmem:[#allocation3 + $0x10] sm:$0xff]
    %v299 = vld [vmem:[#allocation3 + $0x18] sm:$0xff]
    %v300 = vld [vmem:[#allocation3 + $0x20] sm:$0xff]
    %v301 = vld [vmem:[#allocation3 + $0x28] sm:$0xff]
    %v302 = vld [vmem:[#allocation3 + $0x30] sm:$0xff]
    %v303 = vld [vmem:[#allocation3 + $0x38] sm:$0xff]
    %v304 = vld [vmem:[#allocation3 + $0x40] sm:$0xff]
    %v305 = vld [vmem:[#allocation3 + $0x48] sm:$0xff]
    %v306 = vld [vmem:[#allocation3 + $0x50] sm:$0xff]
    %v307 = vld [vmem:[#allocation3 + $0x58] sm:$0xff]
    %v308 = vld [vmem:[#allocation3 + $0x60] sm:$0xff]
    %v309 = vld [vmem:[#allocation3 + $0x68] sm:$0xff]
    %v310 = vld [vmem:[#allocation3 + $0x70] sm:$0xff]
    %v311 = vld [vmem:[#allocation3 + $0x78] sm:$0xff]
    %v312 = vld [vmem:[#allocation3 + $0x80] sm:$0xff]
    %v313 = vld [vmem:[#allocation3 + $0x88] sm:$0xff]
    %v314 = vld [vmem:[#allocation3 + $0x90] sm:$0xff]
    %v315 = vld [vmem:[#allocation3 + $0x98] sm:$0xff]
    %v316 = vld [vmem:[#allocation3 + $0xa0] sm:$0xff]
    %v317 = vld [vmem:[#allocation3 + $0xa8] sm:$0xff]
    %v318 = vld [vmem:[#allocation3 + $0xb0] sm:$0xff]
    %v319 = vld [vmem:[#allocation3 + $0xb8] sm:$0xff]
    %v320 = vld [vmem:[#allocation3 + $0xc0] sm:$0xff]
    %v321 = vld [vmem:[#allocation3 + $0xc8] sm:$0xff]
    %v322 = vld [vmem:[#allocation3 + $0xd0] sm:$0xff]
    %v323 = vld [vmem:[#allocation3 + $0xd8] sm:$0xff]
    %v324 = vld [vmem:[#allocation3 + $0xe0] sm:$0xff]
    %v325 = vld [vmem:[#allocation3 + $0xe8] sm:$0xff]
    %v326 = vld [vmem:[#allocation3 + $0xf0] sm:$0xff]
    %v327 = vld [vmem:[#allocation3 + $0xf8] sm:$0xff]
    %v328 = vld [vmem:[#allocation2 + $0x1] sm:$0xff]
    %v329 = vld [vmem:[#allocation2 + $0x9] sm:$0xff]
    %v330 = vld [vmem:[#allocation2 + $0x11] sm:$0xff]
    %v331 = vld [vmem:[#allocation2 + $0x19] sm:$0xff]
    %v332 = vld [vmem:[#allocation2 + $0x21] sm:$0xff]
    %v333 = vld [vmem:[#allocation2 + $0x29] sm:$0x3f]
    %s334 = scalar_lea.vmem [#allocation3], 256
    %v335 = vld [vmem:[%s334] sm:$0xff]
    %v336 = vld [vmem:[%s334 + $0x8] sm:$0xff]
    %v337 = vld [vmem:[%s334 + $0x10] sm:$0xff]
    %v338 = vld [vmem:[%s334 + $0x18] sm:$0xff]
    %v339 = vld [vmem:[%s334 + $0x20] sm:$0xff]
    %v340 = vld [vmem:[%s334 + $0x28] sm:$0xff]
    %v341 = vld [vmem:[%s334 + $0x30] sm:$0xff]
    %v342 = vld [vmem:[%s334 + $0x38] sm:$0xff]
    %v343 = vld [vmem:[%s334 + $0x40] sm:$0xff]
    %v344 = vld [vmem:[%s334 + $0x48] sm:$0xff]
    %v345 = vld [vmem:[%s334 + $0x50] sm:$0xff]
    %v346 = vld [vmem:[%s334 + $0x58] sm:$0xff]
    %v347 = vld [vmem:[%s334 + $0x60] sm:$0xff]
    %v348 = vld [vmem:[%s334 + $0x68] sm:$0xff]
    %v349 = vld [vmem:[%s334 + $0x70] sm:$0xff]
    %v350 = vld [vmem:[%s334 + $0x78] sm:$0xff]
    %v351 = vld [vmem:[%s334 + $0x80] sm:$0xff]
    %v352 = vld [vmem:[%s334 + $0x88] sm:$0xff]
    %v353 = vld [vmem:[%s334 + $0x90] sm:$0xff]
    %v354 = vld [vmem:[%s334 + $0x98] sm:$0xff]
    %v355 = vld [vmem:[%s334 + $0xa0] sm:$0xff]
    %v356 = vld [vmem:[%s334 + $0xa8] sm:$0xff]
    %v357 = vld [vmem:[%s334 + $0xb0] sm:$0xff]
    %v358 = vld [vmem:[%s334 + $0xb8] sm:$0xff]
    %v359 = vld [vmem:[%s334 + $0xc0] sm:$0xff]
    %v360 = vld [vmem:[%s334 + $0xc8] sm:$0xff]
    %v361 = vld [vmem:[%s334 + $0xd0] sm:$0xff]
    %v362 = vld [vmem:[%s334 + $0xd8] sm:$0xff]
    %v363 = vld [vmem:[%s334 + $0xe0] sm:$0xff]
    %v364 = vld [vmem:[%s334 + $0xe8] sm:$0xff]
    %v365 = vld [vmem:[%s334 + $0xf0] sm:$0xff]
    %v366 = vld [vmem:[%s334 + $0xf8] sm:$0xff]
    %367 = vmatpush.msra.mxu0 %v365
    %368 = vmatpush.msra.mxu0 %v363
    %369 = vmatpush.msra.mxu0 %v361
    %370 = vmatpush.msra.mxu0 %v359
    %371 = vmatpush.msra.mxu0 %v357
    %372 = vmatpush.msra.mxu0 %v355
    %373 = vmatpush.msra.mxu0 %v353
    %374 = vmatpush.msra.mxu0 %v351
    %375 = vmatpush.msra.mxu0 %v349
    %376 = vmatpush.msra.mxu0 %v347
    %377 = vmatpush.msra.mxu0 %v345
    %378 = vmatpush.msra.mxu0 %v343
    %379 = vmatpush.msra.mxu0 %v341
    %380 = vmatpush.msra.mxu0 %v339
    %381 = vmatpush.msra.mxu0 %v337
    %382 = vmatpush.msra.mxu0 %v335
    %383 = vmatmul.f32.gmra.mxu0 %v328
    %v384 = vpop.f32.mrf.mxu0
    %v385 = vadd.f32 0.0, %v384
    %386 = vmatmul.f32.gmra.mxu0 %v329
    %v387 = vpop.f32.mrf.mxu0
    %v388 = vadd.f32 0.0, %v387
    %389 = vmatmul.f32.gmra.mxu0 %v330
    %v390 = vpop.f32.mrf.mxu0
    %391 = vmatmul.f32.gmra.mxu0 %v331
    %v392 = vpop.f32.mrf.mxu0
    %v393 = vadd.f32 0.0, %v392
    %394 = vmatmul.f32.gmra.mxu0 %v332
    %v395 = vpop.f32.mrf.mxu0
    %v396 = vadd.f32 0.0, %v395
    %397 = vmatmul.f32.gmra.mxu0 %v333
    %v398 = vpop.f32.mrf.mxu0
    %399 = vdwg.mxu0
    %400 = vmatpush.msra.mxu0 %v366
    %401 = vmatpush.msra.mxu0 %v364
    %402 = vmatpush.msra.mxu0 %v362
    %403 = vmatpush.msra.mxu0 %v360
    %404 = vmatpush.msra.mxu0 %v358
    %405 = vmatpush.msra.mxu0 %v356
    %406 = vmatpush.msra.mxu0 %v354
    %407 = vmatpush.msra.mxu0 %v352
    %408 = vmatpush.msra.mxu0 %v350
    %409 = vmatpush.msra.mxu0 %v348
    %410 = vmatpush.msra.mxu0 %v346
    %411 = vmatpush.msra.mxu0 %v344
    %412 = vmatpush.msra.mxu0 %v342
    %413 = vmatpush.msra.mxu0 %v340
    %414 = vmatpush.msra.mxu0 %v338
    %415 = vmatpush.msra.mxu0 %v336
    %416 = vmatmul.f32.gmra.mxu0 %v328
    %v417 = vpop.f32.mrf.mxu0
    %v418 = vadd.f32 0.0, %v417
    %419 = vmatmul.f32.gmra.mxu0 %v329
    %v420 = vpop.f32.mrf.mxu0
    %v421 = vadd.f32 0.0, %v420
    %422 = vmatmul.f32.gmra.mxu0 %v330
    %v423 = vpop.f32.mrf.mxu0
    %424 = vmatmul.f32.gmra.mxu0 %v331
    %v425 = vpop.f32.mrf.mxu0
    %v426 = vadd.f32 0.0, %v425
    %427 = vmatmul.f32.gmra.mxu0 %v332
    %v428 = vpop.f32.mrf.mxu0
    %v429 = vadd.f32 0.0, %v428
    %430 = vmatmul.f32.gmra.mxu0 %v333
    %v431 = vpop.f32.mrf.mxu0
    %432 = vdwg.mxu0
    %433 = vmatpush.msra.mxu0 %v326
    %434 = vmatpush.msra.mxu0 %v324
    %435 = vmatpush.msra.mxu0 %v322
    %436 = vmatpush.msra.mxu0 %v320
    %437 = vmatpush.msra.mxu0 %v318
    %438 = vmatpush.msra.mxu0 %v316
    %439 = vmatpush.msra.mxu0 %v314
    %440 = vmatpush.msra.mxu0 %v312
    %441 = vmatpush.msra.mxu0 %v310
    %442 = vmatpush.msra.mxu0 %v308
    %443 = vmatpush.msra.mxu0 %v306
    %444 = vmatpush.msra.mxu0 %v304
    %445 = vmatpush.msra.mxu0 %v302
    %446 = vmatpush.msra.mxu0 %v300
    %447 = vmatpush.msra.mxu0 %v298
    %448 = vmatpush.msra.mxu0 %v296
    %449 = vmatmul.f32.gmra.mxu0 %v290
    %v450 = vpop.f32.mrf.mxu0
    %v451 = vadd.f32 %v385, %v450
    %452 = vmatmul.f32.gmra.mxu0 %v291
    %v453 = vpop.f32.mrf.mxu0
    %v454 = vadd.f32 %v388, %v453
    %455 = vmatmul.f32.gmra.mxu0 %v292
    %v456 = vpop.f32.mrf.mxu0
    %457 = vmatmul.f32.gmra.mxu0 %v293
    %v458 = vpop.f32.mrf.mxu0
    %v459 = vadd.f32 %v393, %v458
    %460 = vmatmul.f32.gmra.mxu0 %v294
    %v461 = vpop.f32.mrf.mxu0
    %v462 = vadd.f32 %v396, %v461
    %463 = vmatmul.f32.gmra.mxu0 %v295
    %v464 = vpop.f32.mrf.mxu0
    %465 = vdwg.mxu0
    %466 = vmatpush.msra.mxu0 %v327
    %467 = vmatpush.msra.mxu0 %v325
    %468 = vmatpush.msra.mxu0 %v323
    %469 = vmatpush.msra.mxu0 %v321
    %470 = vmatpush.msra.mxu0 %v319
    %471 = vmatpush.msra.mxu0 %v317
    %472 = vmatpush.msra.mxu0 %v315
    %473 = vmatpush.msra.mxu0 %v313
    %474 = vmatpush.msra.mxu0 %v311
    %475 = vmatpush.msra.mxu0 %v309
    %476 = vmatpush.msra.mxu0 %v307
    %477 = vmatpush.msra.mxu0 %v305
    %478 = vmatpush.msra.mxu0 %v303
    %479 = vmatpush.msra.mxu0 %v301
    %480 = vmatpush.msra.mxu0 %v299
    %481 = vmatpush.msra.mxu0 %v297
    %482 = vmatmul.f32.gmra.mxu0 %v290
    %v483 = vpop.f32.mrf.mxu0
    %v484 = vadd.f32 %v418, %v483
    %485 = vmatmul.f32.gmra.mxu0 %v291
    %v486 = vpop.f32.mrf.mxu0
    %v487 = vadd.f32 %v421, %v486
    %488 = vmatmul.f32.gmra.mxu0 %v292
    %v489 = vpop.f32.mrf.mxu0
    %490 = vmatmul.f32.gmra.mxu0 %v293
    %v491 = vpop.f32.mrf.mxu0
    %v492 = vadd.f32 %v426, %v491
    %493 = vmatmul.f32.gmra.mxu0 %v294
    %v494 = vpop.f32.mrf.mxu0
    %v495 = vadd.f32 %v429, %v494
    %496 = vmatmul.f32.gmra.mxu0 %v295
    %v497 = vpop.f32.mrf.mxu0
    %498 = vdwg.mxu0
    %v499 = vld [vmem:[#allocation2 + $0x2] sm:$0xff]
    %v500 = vld [vmem:[#allocation2 + $0xa] sm:$0xff]
    %v501 = vld [vmem:[#allocation2 + $0x12] sm:$0xff]
    %v502 = vld [vmem:[#allocation2 + $0x1a] sm:$0xff]
    %v503 = vld [vmem:[#allocation2 + $0x22] sm:$0xff]
    %v504 = vld [vmem:[#allocation2 + $0x2a] sm:$0x3f]
    %s505 = scalar_lea.vmem [#allocation3], 512
    %v506 = vld [vmem:[%s505] sm:$0xff]
    %v507 = vld [vmem:[%s505 + $0x8] sm:$0xff]
    %v508 = vld [vmem:[%s505 + $0x10] sm:$0xff]
    %v509 = vld [vmem:[%s505 + $0x18] sm:$0xff]
    %v510 = vld [vmem:[%s505 + $0x20] sm:$0xff]
    %v511 = vld [vmem:[%s505 + $0x28] sm:$0xff]
    %v512 = vld [vmem:[%s505 + $0x30] sm:$0xff]
    %v513 = vld [vmem:[%s505 + $0x38] sm:$0xff]
    %v514 = vld [vmem:[%s505 + $0x40] sm:$0xff]
    %v515 = vld [vmem:[%s505 + $0x48] sm:$0xff]
    %v516 = vld [vmem:[%s505 + $0x50] sm:$0xff]
    %v517 = vld [vmem:[%s505 + $0x58] sm:$0xff]
    %v518 = vld [vmem:[%s505 + $0x60] sm:$0xff]
    %v519 = vld [vmem:[%s505 + $0x68] sm:$0xff]
    %v520 = vld [vmem:[%s505 + $0x70] sm:$0xff]
    %v521 = vld [vmem:[%s505 + $0x78] sm:$0xff]
    %v522 = vld [vmem:[%s505 + $0x80] sm:$0xff]
    %v523 = vld [vmem:[%s505 + $0x88] sm:$0xff]
    %v524 = vld [vmem:[%s505 + $0x90] sm:$0xff]
    %v525 = vld [vmem:[%s505 + $0x98] sm:$0xff]
    %v526 = vld [vmem:[%s505 + $0xa0] sm:$0xff]
    %v527 = vld [vmem:[%s505 + $0xa8] sm:$0xff]
    %v528 = vld [vmem:[%s505 + $0xb0] sm:$0xff]
    %v529 = vld [vmem:[%s505 + $0xb8] sm:$0xff]
    %v530 = vld [vmem:[%s505 + $0xc0] sm:$0xff]
    %v531 = vld [vmem:[%s505 + $0xc8] sm:$0xff]
    %v532 = vld [vmem:[%s505 + $0xd0] sm:$0xff]
    %v533 = vld [vmem:[%s505 + $0xd8] sm:$0xff]
    %v534 = vld [vmem:[%s505 + $0xe0] sm:$0xff]
    %v535 = vld [vmem:[%s505 + $0xe8] sm:$0xff]
    %v536 = vld [vmem:[%s505 + $0xf0] sm:$0xff]
    %v537 = vld [vmem:[%s505 + $0xf8] sm:$0xff]
    %538 = vmatpush.msra.mxu0 %v536
    %539 = vmatpush.msra.mxu0 %v534
    %540 = vmatpush.msra.mxu0 %v532
    %541 = vmatpush.msra.mxu0 %v530
    %542 = vmatpush.msra.mxu0 %v528
    %543 = vmatpush.msra.mxu0 %v526
    %544 = vmatpush.msra.mxu0 %v524
    %545 = vmatpush.msra.mxu0 %v522
    %546 = vmatpush.msra.mxu0 %v520
    %547 = vmatpush.msra.mxu0 %v518
    %548 = vmatpush.msra.mxu0 %v516
    %549 = vmatpush.msra.mxu0 %v514
    %550 = vmatpush.msra.mxu0 %v512
    %551 = vmatpush.msra.mxu0 %v510
    %552 = vmatpush.msra.mxu0 %v508
    %553 = vmatpush.msra.mxu0 %v506
    %554 = vmatmul.f32.gmra.mxu0 %v499
    %v555 = vpop.f32.mrf.mxu0
    %v556 = vadd.f32 0.0, %v555
    %557 = vmatmul.f32.gmra.mxu0 %v500
    %v558 = vpop.f32.mrf.mxu0
    %v559 = vadd.f32 0.0, %v558
    %560 = vmatmul.f32.gmra.mxu0 %v501
    %v561 = vpop.f32.mrf.mxu0
    %562 = vmatmul.f32.gmra.mxu0 %v502
    %v563 = vpop.f32.mrf.mxu0
    %v564 = vadd.f32 0.0, %v563
    %565 = vmatmul.f32.gmra.mxu0 %v503
    %v566 = vpop.f32.mrf.mxu0
    %v567 = vadd.f32 0.0, %v566
    %568 = vmatmul.f32.gmra.mxu0 %v504
    %v569 = vpop.f32.mrf.mxu0
    %570 = vdwg.mxu0
    %571 = vmatpush.msra.mxu0 %v537
    %572 = vmatpush.msra.mxu0 %v535
    %573 = vmatpush.msra.mxu0 %v533
    %574 = vmatpush.msra.mxu0 %v531
    %575 = vmatpush.msra.mxu0 %v529
    %576 = vmatpush.msra.mxu0 %v527
    %577 = vmatpush.msra.mxu0 %v525
    %578 = vmatpush.msra.mxu0 %v523
    %579 = vmatpush.msra.mxu0 %v521
    %580 = vmatpush.msra.mxu0 %v519
    %581 = vmatpush.msra.mxu0 %v517
    %582 = vmatpush.msra.mxu0 %v515
    %583 = vmatpush.msra.mxu0 %v513
    %584 = vmatpush.msra.mxu0 %v511
    %585 = vmatpush.msra.mxu0 %v509
    %586 = vmatpush.msra.mxu0 %v507
    %587 = vmatmul.f32.gmra.mxu0 %v499
    %v588 = vpop.f32.mrf.mxu0
    %v589 = vadd.f32 0.0, %v588
    %590 = vmatmul.f32.gmra.mxu0 %v500
    %v591 = vpop.f32.mrf.mxu0
    %v592 = vadd.f32 0.0, %v591
    %593 = vmatmul.f32.gmra.mxu0 %v501
    %v594 = vpop.f32.mrf.mxu0
    %595 = vmatmul.f32.gmra.mxu0 %v502
    %v596 = vpop.f32.mrf.mxu0
    %v597 = vadd.f32 0.0, %v596
    %598 = vmatmul.f32.gmra.mxu0 %v503
    %v599 = vpop.f32.mrf.mxu0
    %v600 = vadd.f32 0.0, %v599
    %601 = vmatmul.f32.gmra.mxu0 %v504
    %v602 = vpop.f32.mrf.mxu0
    %603 = vdwg.mxu0
    %v604 = vadd.f32 %v451, %v556
    %v605 = vadd.f32 %v484, %v589
    %v606 = vadd.f32 %v454, %v559
    %v607 = vadd.f32 %v487, %v592
    %v608 = vadd.f32 %v459, %v564
    %v609 = vadd.f32 %v492, %v597
    %v610 = vadd.f32 %v462, %v567
    %v611 = vadd.f32 %v495, %v600
    %v612 = vld [vmem:[%s4] sm:$0x3]
    %v614 = vperm.slane %v612, 0
    %v615 = vperm.slane %v612, 1
    %v618 = vadd.f32 %v604, %v614
    %v619 = vadd.f32 %v605, %v615
    %v620 = vadd.f32 %v606, %v614
    %v621 = vadd.f32 %v607, %v615
    %622 = vst [vmem:[#allocation6] sm:$0xff] %v618
    %623 = vst [vmem:[#allocation6 + $0x8] sm:$0xff] %v619
    %624 = vst [vmem:[#allocation6 + $0x10] sm:$0xff] %v620
    %625 = vst [vmem:[#allocation6 + $0x18] sm:$0xff] %v621
    %v626 = vld [vmem:[%s4] sm:$0x3]
    %v628 = vperm.slane %v626, 0
    %v629 = vperm.slane %v626, 1
    %v632 = vadd.f32 %v608, %v628
    %v633 = vadd.f32 %v609, %v629
    %v634 = vadd.f32 %v610, %v628
    %v635 = vadd.f32 %v611, %v629
    %636 = vst [vmem:[#allocation6 + $0x20] sm:$0xff] %v632
    %637 = vst [vmem:[#allocation6 + $0x28] sm:$0xff] %v633
    %638 = vst [vmem:[#allocation6 + $0x30] sm:$0xff] %v634
    %639 = vst [vmem:[#allocation6 + $0x38] sm:$0xff] %v635
    %v640 = vld [vmem:[#allocation6] sm:$0xff]
    %v641 = vld [vmem:[#allocation6 + $0x8] sm:$0xff]
    %v642 = vld [vmem:[#allocation6 + $0x10] sm:$0xff]
    %v643 = vld [vmem:[#allocation6 + $0x18] sm:$0xff]
    %v644 = vld [vmem:[#allocation6 + $0x20] sm:$0xff]
    %v645 = vld [vmem:[#allocation6 + $0x28] sm:$0xff]
    %v646 = vld [vmem:[#allocation6 + $0x30] sm:$0xff]
    %v647 = vld [vmem:[#allocation6 + $0x38] sm:$0xff]
    %v648 = vadd.f32 %v640, %v642
    %v649 = vadd.f32 %v648, %v644
    %v650 = vadd.f32 %v649, %v646
    %v651 = vrot.slane %v650, 4
    %v652 = vadd.f32 %v650, %v651
    %v653 = vrot.slane %v652, 2
    %v654 = vadd.f32 %v652, %v653
    %v655 = vrot.slane %v654, 1
    %v656 = vadd.f32 %v654, %v655
    %v657 = vadd.f32 %v641, %v643
    %v658 = vadd.f32 %v657, %v645
    %v659 = vadd.f32 %v658, %v647
    %v660 = vrot.slane %v659, 4
    %v661 = vadd.f32 %v659, %v660
    %v662 = vrot.slane %v661, 2
    %v663 = vadd.f32 %v661, %v662
    %v664 = vrot.slane %v663, 1
    %v665 = vadd.f32 %v663, %v664
    %v666 = vmul.f32 %v640, %v640
    %v667 = vmul.f32 %v641, %v641
    %v668 = vmul.f32 %v642, %v642
    %v669 = vmul.f32 %v643, %v643
    %v670 = vmul.f32 %v644, %v644
    %v671 = vmul.f32 %v645, %v645
    %v672 = vmul.f32 %v646, %v646
    %v673 = vmul.f32 %v647, %v647
    %v674 = vadd.f32 %v666, %v668
    %v675 = vadd.f32 %v674, %v670
    %v676 = vadd.f32 %v675, %v672
    %v677 = vrot.slane %v676, 4
    %v678 = vadd.f32 %v676, %v677
    %v679 = vrot.slane %v678, 2
    %v680 = vadd.f32 %v678, %v679
    %v681 = vrot.slane %v680, 1
    %v682 = vadd.f32 %v680, %v681
    %v683 = vadd.f32 %v667, %v669
    %v684 = vadd.f32 %v683, %v671
    %v685 = vadd.f32 %v684, %v673
    %v686 = vrot.slane %v685, 4
    %v687 = vadd.f32 %v685, %v686
    %v688 = vrot.slane %v687, 2
    %v689 = vadd.f32 %v687, %v688
    %v690 = vrot.slane %v689, 1
    %v691 = vadd.f32 %v689, %v690
    %v692 = vsel %vm259, %v656, %v682
    %v693 = vsel %vm259, %v665, %v691
    %v694 = vld [vmem:[%s5] sm:$0xff]
    %v695 = vld [vmem:[%s5 + $0x8] sm:$0xff]
    %v696 = vld [vmem:[%s5 + $0x10] sm:$0xff]
    %v697 = vld [vmem:[%s5 + $0x18] sm:$0xff]
    %v698 = vld [vmem:[%s5 + $0x20] sm:$0xff]
    %v699 = vld [vmem:[%s5 + $0x28] sm:$0xff]
    %v700 = vld [vmem:[%s5 + $0x30] sm:$0xff]
    %v701 = vld [vmem:[%s5 + $0x38] sm:$0xff]
    %v702 = vld [vmem:[%s5 + $0x40] sm:$0xff]
    %v703 = vld [vmem:[%s5 + $0x48] sm:$0xff]
    %v704 = vld [vmem:[%s5 + $0x50] sm:$0xff]
    %v705 = vld [vmem:[%s5 + $0x58] sm:$0xff]
    %v706 = vld [vmem:[%s5 + $0x60] sm:$0xff]
    %v707 = vld [vmem:[%s5 + $0x68] sm:$0xff]
    %v708 = vld [vmem:[%s5 + $0x70] sm:$0xff]
    %v709 = vld [vmem:[%s5 + $0x78] sm:$0xff]
    %v710 = vld [vmem:[%s5 + $0x80] sm:$0xff]
    %v711 = vld [vmem:[%s5 + $0x88] sm:$0xff]
    %v712 = vld [vmem:[%s5 + $0x90] sm:$0xff]
    %v713 = vld [vmem:[%s5 + $0x98] sm:$0xff]
    %v714 = vld [vmem:[%s5 + $0xa0] sm:$0xff]
    %v715 = vld [vmem:[%s5 + $0xa8] sm:$0xff]
    %v716 = vld [vmem:[%s5 + $0xb0] sm:$0xff]
    %v717 = vld [vmem:[%s5 + $0xb8] sm:$0xff]
    %v718 = vld [vmem:[%s5 + $0xc0] sm:$0xff]
    %v719 = vld [vmem:[%s5 + $0xc8] sm:$0xff]
    %v720 = vld [vmem:[%s5 + $0xd0] sm:$0xff]
    %v721 = vld [vmem:[%s5 + $0xd8] sm:$0xff]
    %v722 = vld [vmem:[%s5 + $0xe0] sm:$0xff]
    %v723 = vld [vmem:[%s5 + $0xe8] sm:$0xff]
    %v724 = vld [vmem:[%s5 + $0xf0] sm:$0xff]
    %v725 = vld [vmem:[%s5 + $0xf8] sm:$0xff]
    %726 = vmatpush.msra.mxu0 %v709
    %727 = vmatpush.msra.mxu0 %v708
    %728 = vmatpush.msra.mxu0 %v707
    %729 = vmatpush.msra.mxu0 %v706
    %730 = vmatpush.msra.mxu0 %v705
    %731 = vmatpush.msra.mxu0 %v704
    %732 = vmatpush.msra.mxu0 %v703
    %733 = vmatpush.msra.mxu0 %v702
    %734 = vmatpush.msra.mxu0 %v701
    %735 = vmatpush.msra.mxu0 %v700
    %736 = vmatpush.msra.mxu0 %v699
    %737 = vmatpush.msra.mxu0 %v698
    %738 = vmatpush.msra.mxu0 %v697
    %739 = vmatpush.msra.mxu0 %v696
    %740 = vmatpush.msra.mxu0 %v695
    %741 = vmatpush.msra.mxu0 %v694
    %742 = vmatmul.f32.gmra.mxu0 %v692
    %v743 = vpop.f32.mrf.mxu0
    %v744 = vadd.f32 0.0, %v743
    %745 = vdwg.mxu0
    %746 = vmatpush.msra.mxu0 %v725
    %747 = vmatpush.msra.mxu0 %v724
    %748 = vmatpush.msra.mxu0 %v723
    %749 = vmatpush.msra.mxu0 %v722
    %750 = vmatpush.msra.mxu0 %v721
    %751 = vmatpush.msra.mxu0 %v720
    %752 = vmatpush.msra.mxu0 %v719
    %753 = vmatpush.msra.mxu0 %v718
    %754 = vmatpush.msra.mxu0 %v717
    %755 = vmatpush.msra.mxu0 %v716
    %756 = vmatpush.msra.mxu0 %v715
    %757 = vmatpush.msra.mxu0 %v714
    %758 = vmatpush.msra.mxu0 %v713
    %759 = vmatpush.msra.mxu0 %v712
    %760 = vmatpush.msra.mxu0 %v711
    %761 = vmatpush.msra.mxu0 %v710
    %762 = vmatmul.f32.gmra.mxu0 %v693
    %v763 = vpop.f32.mrf.mxu0
    %v764 = vadd.f32 %v744, %v763
    %765 = vdwg.mxu0
    %v766 = vrcp.pop 512.0
    %v767 = vmul.f32 512.0, %v766
    %v768 = vsub.f32 1.0, %v767
    %v769 = vmul.f32 %v766, %v768
    %v770 = vadd.f32 %v766, %v769
    %vm771 = vweird.f32 %v766
    %v772 = vsel %vm771, %v766, %v770
    %v773 = vmul.f32 %v764, %v772
    %v774 = vmul.f32 %v773, %v773
    %v776 = vrot.slane %v774, 7
    %v778 = vsub.f32 %v773, %v776
    %v779 = vld [vmem:[%s7] sm:$0x1]
    %v780 = vadd.f32 %v778, 1e-05
    %v781 = vrsqrt.pop %v780
    %v782 = vmul.f32 %v781, %v780
    %v783 = vmul.f32 %v782, %v781
    %v784 = vmul.f32 0.5, %v783
    %v785 = vsub.f32 1.5, %v784
    %v786 = vmul.f32 %v781, %v785
    %vm787 = vweird.f32 %v780
    %vm788 = vweird.f32 %v781
    %vm789 = vmor %vm787, %vm788
    %v790 = vsel %vm789, %v781, %v786
    %792 = vst [vmem:[#allocation1] sm:$0xff] %v790
    %s793 = scalar_lea.vmem [#allocation1], 1
    %v794 = vld [vmem:[%s793] ss:$9 sm:$0xff]
    %v796 = vmul.f32 %v779, %v794
    %v797 = vld [vmem:[%s8] sm:$0x1]
    %v798 = vmul.f32 %v773, %v796
    %v799 = vsub.f32 %v797, %v798
    %v801 = vperm.slane %v799, 0
    %v803 = vsel %vm259, %v796, %v801
    %v804 = vld [vmem:[%s6] sm:$0xff]
    %v805 = vld [vmem:[%s6 + $0x8] sm:$0xff]
    %v806 = vld [vmem:[%s6 + $0x10] sm:$0xff]
    %v807 = vld [vmem:[%s6 + $0x18] sm:$0xff]
    %vm808 = vcmask 130048
    %v810 = vsel %vm808, %v803, 0
    %812 = vmatpush.msra.mxu0 0.0
    %813 = vmatpush.msra.mxu0 0.0
    %814 = vmatpush.msra.mxu0 0.0
    %815 = vmatpush.msra.mxu0 0.0
    %816 = vmatpush.msra.mxu0 0.0
    %817 = vmatpush.msra.mxu0 0.0
    %818 = vmatpush.msra.mxu0 0.0
    %819 = vmatpush.msra.mxu0 0.0
    %820 = vmatpush.msra.mxu0 0.0
    %821 = vmatpush.msra.mxu0 0.0
    %822 = vmatpush.msra.mxu0 0.0
    %823 = vmatpush.msra.mxu0 0.0
    %824 = vmatpush.msra.mxu0 0.0
    %825 = vmatpush.msra.mxu0 0.0
    %826 = vmatpush.msra.mxu0 %v806
    %827 = vmatpush.msra.mxu0 %v804
    %828 = vmatmul.f32.gmra.mxu0 %v810
    %v829 = vpop.f32.mrf.mxu0
    %v830 = vadd.f32 0.0, %v829
    %831 = vdwg.mxu0
    %832 = vmatpush.msra.mxu0 0.0
    %833 = vmatpush.msra.mxu0 0.0
    %834 = vmatpush.msra.mxu0 0.0
    %835 = vmatpush.msra.mxu0 0.0
    %836 = vmatpush.msra.mxu0 0.0
    %837 = vmatpush.msra.mxu0 0.0
    %838 = vmatpush.msra.mxu0 0.0
    %839 = vmatpush.msra.mxu0 0.0
    %840 = vmatpush.msra.mxu0 0.0
    %841 = vmatpush.msra.mxu0 0.0
    %842 = vmatpush.msra.mxu0 0.0
    %843 = vmatpush.msra.mxu0 0.0
    %844 = vmatpush.msra.mxu0 0.0
    %845 = vmatpush.msra.mxu0 0.0
    %846 = vmatpush.msra.mxu0 %v807
    %847 = vmatpush.msra.mxu0 %v805
    %848 = vmatmul.f32.gmra.mxu0 %v810
    %v849 = vpop.f32.mrf.mxu0
    %v850 = vadd.f32 0.0, %v849
    %851 = vdwg.mxu0
    %v852 = vperm.slane %v830, 0
    %v853 = vperm.slane %v850, 0
    %v854 = vmul.f32 %v640, %v852
    %v855 = vmul.f32 %v641, %v853
    %v856 = vmul.f32 %v642, %v852
    %v857 = vmul.f32 %v643, %v853
    %v858 = vmul.f32 %v644, %v852
    %v859 = vmul.f32 %v645, %v853
    %v860 = vmul.f32 %v646, %v852
    %v861 = vmul.f32 %v647, %v853
    %v862 = vperm.slane %v830, 1
    %v863 = vperm.slane %v850, 1
    %v864 = vadd.f32 %v854, %v862
    %v865 = vadd.f32 %v855, %v863
    %v866 = vadd.f32 %v856, %v862
    %v867 = vadd.f32 %v857, %v863
    %v868 = vadd.f32 %v858, %v862
    %v869 = vadd.f32 %v859, %v863
    %v870 = vadd.f32 %v860, %v862
    %v871 = vadd.f32 %v861, %v863
    %v872 = vmax.f32 %v864, 0.0
    %v873 = vmax.f32 %v865, 0.0
    %v874 = vmax.f32 %v866, 0.0
    %v875 = vmax.f32 %v867, 0.0
    %v876 = vmax.f32 %v868, 0.0
    %v877 = vmax.f32 %v869, 0.0
    %v878 = vmax.f32 %v870, 0.0
    %v879 = vmax.f32 %v871, 0.0
    %880 = vst [vmem:[#allocation6] sm:$0xff] %v872
    %881 = vst [vmem:[#allocation6 + $0x8] sm:$0xff] %v873
    %882 = vst [vmem:[#allocation6 + $0x10] sm:$0xff] %v874
    %883 = vst [vmem:[#allocation6 + $0x18] sm:$0xff] %v875
    %884 = vst [vmem:[#allocation6 + $0x20] sm:$0xff] %v876
    %885 = vst [vmem:[#allocation6 + $0x28] sm:$0xff] %v877
    %886 = vst [vmem:[#allocation6 + $0x30] sm:$0xff] %v878
    %887 = vst [vmem:[#allocation6 + $0x38] sm:$0xff] %v879
    // Predicated region
    $region42: #{tpu_custom_call.1} parent=1 // pred_check
      _
    $region43: #{tpu_custom_call.1} parent=1 // pred_check_branch
      %889 = sbr.rel (0) target = $region45
    $region44: #{tpu_custom_call.1} parent=1 // pred_region
      %891 = vsyncadd [#allocation5], 0
      %s892 = sshll.u32 [#allocation6], 4
      %s893 = int_to_ptr.vmem [resolvable:$true] %s892
      %s894 = sshll.u32 %s9, 4
      %s895 = int_to_ptr.hbm [resolvable:$true] %s894
      %900 = dma.vmem_to_hbm [thread:$0]  %s893, 1024, %s895, [#allocation5], 256, 256, 16
    $region45: #{tpu_custom_call.1} parent=1 // pred_fallthru
      _
    // Predicated region
    $region46: #{tpu_custom_call.1} parent=1 // pred_check
      _
    $region47: #{tpu_custom_call.1} parent=1 // pred_check_branch
      %902 = sbr.rel (0) target = $region49
    $region48: #{tpu_custom_call.1} parent=1 // pred_region
      %904 = dma.done [#allocation5], 1024
    $region49: #{tpu_custom_call.1} parent=1 // pred_fallthru
      _
    %905 = vsyncpa [#allocation4], 1
    %906 = vsyncpa [#allocation5], 1

</llo_original>
